<compile_context>
chip_gen: v5e
topology: v5e:2x2
jax: 0.10.0
libtpu: 0.0.40
codegen_flags: <defaults>
</compile_context>

<pallas_src>
import jax
import jax.numpy as jnp
from jax.experimental import pallas as pl
from jax.experimental.pallas import tpu as pltpu

LANE = 128  # TPU lane width


def _round_up(x, m):
    return ((x + m - 1) // m) * m


def actor_kernel(x_ref,
                 w1_ref, b1_ref,
                 w2_ref, b2_ref,
                 w3_ref, b3_ref,
                 w4_ref, b4_ref,
                 out_ref):
    """Fused 4-layer MLP forward for one batch tile (everything in VMEM).

    MXU inputs are bf16; accumulation, bias add, relu and tanh run in f32.
    """
    x = x_ref[...]                                                        # bf16

    # layer1 + relu
    h = jnp.dot(x, w1_ref[...], preferred_element_type=jnp.float32) + b1_ref[...]
    h = jnp.maximum(h, 0.0).astype(jnp.bfloat16)
    # layer2 + relu
    h = jnp.dot(h, w2_ref[...], preferred_element_type=jnp.float32) + b2_ref[...]
    h = jnp.maximum(h, 0.0).astype(jnp.bfloat16)
    # layer3 + relu
    h = jnp.dot(h, w3_ref[...], preferred_element_type=jnp.float32) + b3_ref[...]
    h = jnp.maximum(h, 0.0).astype(jnp.bfloat16)
    # out_layer (lane-padded to 128 cols); 2*sigmoid(z)-1 == tanh(z/2).
    logits = jnp.dot(h, w4_ref[...], preferred_element_type=jnp.float32) + b4_ref[...]
    out_ref[...] = jnp.tanh(logits * 0.5).astype(out_ref.dtype)


def actor_forward(state, params, *, batch_tile=4096):
    """Fused Actor forward.  Weights are grid-invariant; batch is tiled only
    when it exceeds `batch_tile` rows (default keeps grid=(1,) for typical
    DDPG batch sizes)."""
    (w1, b1), (w2, b2), (w3, b3), (w4, b4) = params
    B, n_in = state.shape
    hidden = w1.shape[1]
    n_out = w4.shape[1]

    # --- choose batch tile: one grid step unless the batch is very large ---
    bt = _round_up(min(batch_tile, _round_up(B, 16)), 16)   # 16: bf16 sublane pack
    B_pad = _round_up(B, bt)

    # --- pad every width to lane/sublane-friendly sizes (zeros are exact) ---
    n_in_pad = _round_up(n_in, 16)          # 17 -> 32
    hid_pad = _round_up(hidden, LANE)       # 32 -> 128
    n_out_pad = _round_up(n_out, LANE)      # 6  -> 128

    state_p = jnp.pad(state, ((0, B_pad - B), (0, n_in_pad - n_in)))
    w1p = jnp.pad(w1, ((0, n_in_pad - n_in), (0, hid_pad - hidden)))
    w2p = jnp.pad(w2, ((0, hid_pad - hidden), (0, hid_pad - hidden)))
    w3p = jnp.pad(w3, ((0, hid_pad - hidden), (0, hid_pad - hidden)))
    w4p = jnp.pad(w4, ((0, hid_pad - hidden), (0, n_out_pad - n_out)))
    b1p = jnp.pad(b1, ((0, 0), (0, hid_pad - hidden)))
    b2p = jnp.pad(b2, ((0, 0), (0, hid_pad - hidden)))
    b3p = jnp.pad(b3, ((0, 0), (0, hid_pad - hidden)))
    b4p = jnp.pad(b4, ((0, 0), (0, n_out_pad - n_out)))

    # bf16 MXU inputs (state + weights); biases stay f32 for the f32 epilogue.
    state_p = state_p.astype(jnp.bfloat16)
    w1p, w2p, w3p, w4p = (w.astype(jnp.bfloat16) for w in (w1p, w2p, w3p, w4p))

    grid_steps = B_pad // bt
    grid = (grid_steps,)
    # Single-TC chips (v5e/v6e) gain nothing from "parallel"; on v7x only
    # shard across cores when there is real work per step (huge batches).
    dim_sem = ("parallel",) if grid_steps > 1 else ("arbitrary",)

    def rep(shape):
        # full-array block, same block for every grid step (weights / biases)
        return pl.BlockSpec(shape, lambda i: (0, 0))

    flops = 2 * B_pad * (n_in_pad * hid_pad + 2 * hid_pad * hid_pad
                         + hid_pad * n_out_pad)
    bytes_accessed = (
        2 * (B_pad * n_in_pad)                                        # bf16 state
        + 2 * (n_in_pad * hid_pad + 2 * hid_pad * hid_pad + hid_pad * n_out_pad)
        + 4 * (3 * hid_pad + n_out_pad)                               # f32 biases
        + 4 * (B_pad * n_out_pad)                                     # f32 out
    )
    cost = pl.CostEstimate(
        flops=flops,
        transcendentals=B_pad * n_out_pad,   # tanh on the EUP
        bytes_accessed=bytes_accessed,
    )

    out_pad = pl.pallas_call(
        actor_kernel,
        out_shape=jax.ShapeDtypeStruct((B_pad, n_out_pad), jnp.float32),
        grid_spec=pltpu.PrefetchScalarGridSpec(
            num_scalar_prefetch=0,
            grid=grid,
            in_specs=[
                pl.BlockSpec((bt, n_in_pad), lambda i: (i, 0)),
                rep(w1p.shape), rep(b1p.shape),
                rep(w2p.shape), rep(b2p.shape),
                rep(w3p.shape), rep(b3p.shape),
                rep(w4p.shape), rep(b4p.shape),
            ],
            out_specs=pl.BlockSpec((bt, n_out_pad), lambda i: (i, 0)),
        ),
        compiler_params=pltpu.CompilerParams(dimension_semantics=dim_sem),
        cost_estimate=cost,
    )(state_p, w1p, b1p, w2p, b2p, w3p, b3p, w4p, b4p)

    # strip batch and lane padding
    return out_pad[:B, :n_out]


def init_linear(key, fan_in, fan_out):
    """torch.nn.Linear default init: U[-1/sqrt(fan_in), 1/sqrt(fan_in)].
    Weight returned as [in, out] (transposed vs torch's [out, in])."""
    kw, kb = jax.random.split(key)
    bound = 1.0 / jnp.sqrt(jnp.float32(fan_in))
    w = jax.random.uniform(kw, (fan_in, fan_out), jnp.float32, -bound, bound)
    b = jax.random.uniform(kb, (1, fan_out), jnp.float32, -bound, bound)
    return w, b


def reference_forward_f32(state, params):
    """Pure-f32 reference (matches the PyTorch module bit-for-bit in math)."""
    (w1, b1), (w2, b2), (w3, b3), (w4, b4) = params
    h = jax.nn.relu(state @ w1 + b1)
    h = jax.nn.relu(h @ w2 + b2)
    h = jax.nn.relu(h @ w3 + b3)
    return jax.nn.sigmoid(h @ w4 + b4) * 2.0 - 1.0


def reference_forward_bf16(state, params):
    """Reference that mirrors the kernel's bf16-MXU / f32-accumulate numerics."""
    (w1, b1), (w2, b2), (w3, b3), (w4, b4) = params

    def lin(x, w, b):
        return jnp.dot(x, w.astype(jnp.bfloat16),
                       preferred_element_type=jnp.float32) + b

    h = state.astype(jnp.bfloat16)
    h = jnp.maximum(lin(h, w1, b1), 0.0).astype(jnp.bfloat16)
    h = jnp.maximum(lin(h, w2, b2), 0.0).astype(jnp.bfloat16)
    h = jnp.maximum(lin(h, w3, b3), 0.0).astype(jnp.bfloat16)
    return jnp.tanh(lin(h, w4, b4) * 0.5)


if __name__ == "__main__":
    # Shapes consistent with DDPG on HalfCheetah:
    #   obs dim = 17, action dim = 6, hidden = 32, batch = 256.
    # batch_tile default (4096) >= 256 -> single grid step.
    batch, num_inputs, num_actions, hidden = 256, 17, 6, 32

    key = jax.random.PRNGKey(0)
    k_s, k1, k2, k3, k4 = jax.random.split(key, 5)

    state = jax.random.normal(k_s, (batch, num_inputs), jnp.float32)

    params = (
        init_linear(k1, num_inputs, hidden),   # layer1
        init_linear(k2, hidden, hidden),       # layer2
        init_linear(k3, hidden, hidden),       # layer3
        init_linear(k4, hidden, num_actions),  # out_layer
    )

    act = actor_forward(state, params)
    act = jax.block_until_ready(act)

    act_ref_f32 = reference_forward_f32(state, params)
    act_ref_bf16 = reference_forward_bf16(state, params)

    assert act.shape == (batch, num_actions)
    assert jnp.all(jnp.abs(act) <= 1.0), "actions must lie in [-1, 1]"
    # Tight check against a reference with matching bf16-MXU numerics.
    assert jnp.allclose(act, act_ref_bf16, atol=1e-3, rtol=1e-3), \
        "mismatch vs bf16-matched JAX reference"
    # Loose check against the exact f32 module math (bf16 quantization error).
    assert jnp.allclose(act, act_ref_f32, atol=3e-2, rtol=3e-2), \
        "mismatch vs f32 JAX reference"

    print("KERNEL_OK")
</pallas_src>

<mosaic_0001>
module attributes {stable_mosaic.version = 11 : i64} {
  func.func @actor_kernel(%arg0: i32, %arg1: memref<256x32xbf16, #tpu.memory_space<vmem>>, %arg2: memref<32x128xbf16, #tpu.memory_space<vmem>>, %arg3: memref<1x128xf32, #tpu.memory_space<vmem>>, %arg4: memref<128x128xbf16, #tpu.memory_space<vmem>>, %arg5: memref<1x128xf32, #tpu.memory_space<vmem>>, %arg6: memref<128x128xbf16, #tpu.memory_space<vmem>>, %arg7: memref<1x128xf32, #tpu.memory_space<vmem>>, %arg8: memref<128x128xbf16, #tpu.memory_space<vmem>>, %arg9: memref<1x128xf32, #tpu.memory_space<vmem>>, %arg10: memref<256x128xf32, #tpu.memory_space<vmem>>) attributes {dimension_semantics = [#tpu.dimension_semantics<arbitrary>], iteration_bounds = array<i64: 1>, scalar_prefetch = 0 : i64, scratch_operands = 0 : i64, tpu.core_type = #tpu.core_type<tc>, window_params = [{transform_indices = @transform_0, window_bounds = array<i64: 256, 32>}, {pipeline_mode = #tpu.pipeline_mode<synchronous>, transform_indices = @transform_1, window_bounds = array<i64: 32, 128>}, {pipeline_mode = #tpu.pipeline_mode<synchronous>, transform_indices = @transform_2, window_bounds = array<i64: 1, 128>}, {pipeline_mode = #tpu.pipeline_mode<synchronous>, transform_indices = @transform_3, window_bounds = array<i64: 128, 128>}, {pipeline_mode = #tpu.pipeline_mode<synchronous>, transform_indices = @transform_4, window_bounds = array<i64: 1, 128>}, {pipeline_mode = #tpu.pipeline_mode<synchronous>, transform_indices = @transform_5, window_bounds = array<i64: 128, 128>}, {pipeline_mode = #tpu.pipeline_mode<synchronous>, transform_indices = @transform_6, window_bounds = array<i64: 1, 128>}, {pipeline_mode = #tpu.pipeline_mode<synchronous>, transform_indices = @transform_7, window_bounds = array<i64: 128, 128>}, {pipeline_mode = #tpu.pipeline_mode<synchronous>, transform_indices = @transform_8, window_bounds = array<i64: 1, 128>}, {transform_indices = @transform_9, window_bounds = array<i64: 256, 128>}]} {
    %c0 = arith.constant 0 : index
    %c0_0 = arith.constant 0 : index
    %0 = vector.load %arg1[%c0, %c0_0] : memref<256x32xbf16, #tpu.memory_space<vmem>>, vector<256x32xbf16>
    %c0_1 = arith.constant 0 : index
    %c0_2 = arith.constant 0 : index
    %1 = vector.load %arg2[%c0_1, %c0_2] : memref<32x128xbf16, #tpu.memory_space<vmem>>, vector<32x128xbf16>
    %cst = arith.constant dense<0.000000e+00> : vector<256x128xf32>
    %2 = tpu.matmul %0, %1, %cst {dimension_numbers = #tpu.dot_dimension_numbers<[1], [0], [0], [1], [0, 0, 1, 1], [], []>} : vector<256x32xbf16>, vector<32x128xbf16>, vector<256x128xf32> -> vector<256x128xf32>
    %c0_3 = arith.constant 0 : index
    %c0_4 = arith.constant 0 : index
    %3 = vector.load %arg3[%c0_3, %c0_4] : memref<1x128xf32, #tpu.memory_space<vmem>>, vector<1x128xf32>
    %4 = vector.broadcast %3 : vector<1x128xf32> to vector<256x128xf32>
    %5 = arith.addf %2, %4 : vector<256x128xf32>
    %cst_5 = arith.constant 0.000000e+00 : f32
    %6 = vector.broadcast %cst_5 : f32 to vector<256x128xf32>
    %7 = arith.maximumf %5, %6 : vector<256x128xf32>
    %8 = arith.truncf %7 : vector<256x128xf32> to vector<256x128xbf16>
    %c0_6 = arith.constant 0 : index
    %c0_7 = arith.constant 0 : index
    %9 = vector.load %arg4[%c0_6, %c0_7] : memref<128x128xbf16, #tpu.memory_space<vmem>>, vector<128x128xbf16>
    %cst_8 = arith.constant dense<0.000000e+00> : vector<256x128xf32>
    %10 = tpu.matmul %8, %9, %cst_8 {dimension_numbers = #tpu.dot_dimension_numbers<[1], [0], [0], [1], [0, 0, 1, 1], [], []>} : vector<256x128xbf16>, vector<128x128xbf16>, vector<256x128xf32> -> vector<256x128xf32>
    %c0_9 = arith.constant 0 : index
    %c0_10 = arith.constant 0 : index
    %11 = vector.load %arg5[%c0_9, %c0_10] : memref<1x128xf32, #tpu.memory_space<vmem>>, vector<1x128xf32>
    %12 = vector.broadcast %11 : vector<1x128xf32> to vector<256x128xf32>
    %13 = arith.addf %10, %12 : vector<256x128xf32>
    %cst_11 = arith.constant 0.000000e+00 : f32
    %14 = vector.broadcast %cst_11 : f32 to vector<256x128xf32>
    %15 = arith.maximumf %13, %14 : vector<256x128xf32>
    %16 = arith.truncf %15 : vector<256x128xf32> to vector<256x128xbf16>
    %c0_12 = arith.constant 0 : index
    %c0_13 = arith.constant 0 : index
    %17 = vector.load %arg6[%c0_12, %c0_13] : memref<128x128xbf16, #tpu.memory_space<vmem>>, vector<128x128xbf16>
    %cst_14 = arith.constant dense<0.000000e+00> : vector<256x128xf32>
    %18 = tpu.matmul %16, %17, %cst_14 {dimension_numbers = #tpu.dot_dimension_numbers<[1], [0], [0], [1], [0, 0, 1, 1], [], []>} : vector<256x128xbf16>, vector<128x128xbf16>, vector<256x128xf32> -> vector<256x128xf32>
    %c0_15 = arith.constant 0 : index
    %c0_16 = arith.constant 0 : index
    %19 = vector.load %arg7[%c0_15, %c0_16] : memref<1x128xf32, #tpu.memory_space<vmem>>, vector<1x128xf32>
    %20 = vector.broadcast %19 : vector<1x128xf32> to vector<256x128xf32>
    %21 = arith.addf %18, %20 : vector<256x128xf32>
    %cst_17 = arith.constant 0.000000e+00 : f32
    %22 = vector.broadcast %cst_17 : f32 to vector<256x128xf32>
    %23 = arith.maximumf %21, %22 : vector<256x128xf32>
    %24 = arith.truncf %23 : vector<256x128xf32> to vector<256x128xbf16>
    %c0_18 = arith.constant 0 : index
    %c0_19 = arith.constant 0 : index
    %25 = vector.load %arg8[%c0_18, %c0_19] : memref<128x128xbf16, #tpu.memory_space<vmem>>, vector<128x128xbf16>
    %cst_20 = arith.constant dense<0.000000e+00> : vector<256x128xf32>
    %26 = tpu.matmul %24, %25, %cst_20 {dimension_numbers = #tpu.dot_dimension_numbers<[1], [0], [0], [1], [0, 0, 1, 1], [], []>} : vector<256x128xbf16>, vector<128x128xbf16>, vector<256x128xf32> -> vector<256x128xf32>
    %c0_21 = arith.constant 0 : index
    %c0_22 = arith.constant 0 : index
    %27 = vector.load %arg9[%c0_21, %c0_22] : memref<1x128xf32, #tpu.memory_space<vmem>>, vector<1x128xf32>
    %28 = vector.broadcast %27 : vector<1x128xf32> to vector<256x128xf32>
    %29 = arith.addf %26, %28 : vector<256x128xf32>
    %cst_23 = arith.constant 5.000000e-01 : f32
    %30 = vector.broadcast %cst_23 : f32 to vector<256x128xf32>
    %31 = arith.mulf %29, %30 : vector<256x128xf32>
    %32 = math.tanh %31 : vector<256x128xf32>
    %c0_24 = arith.constant 0 : index
    %c0_25 = arith.constant 0 : index
    %33 = vector.load %arg10[%c0_24, %c0_25] : memref<256x128xf32, #tpu.memory_space<vmem>>, vector<256x128xf32>
    tpu.vector_store %arg10[%c0_24, %c0_25], %32 {strides = array<i32>} : memref<256x128xf32, #tpu.memory_space<vmem>>, vector<256x128xf32>,
    return
  }
  func.func @transform_0(%arg0: i32) -> (i32, i32) {
    %c0_i32 = arith.constant 0 : i32
    %c0_i32_0 = arith.constant 0 : i32
    return %arg0, %c0_i32 : i32, i32
  }
  func.func @transform_1(%arg0: i32) -> (i32, i32) {
    %c0_i32 = arith.constant 0 : i32
    %c0_i32_0 = arith.constant 0 : i32
    %c0_i32_1 = arith.constant 0 : i32
    return %c0_i32, %c0_i32_0 : i32, i32
  }
  func.func @transform_2(%arg0: i32) -> (i32, i32) {
    %c0_i32 = arith.constant 0 : i32
    %c0_i32_0 = arith.constant 0 : i32
    %c0_i32_1 = arith.constant 0 : i32
    return %c0_i32, %c0_i32_0 : i32, i32
  }
  func.func @transform_3(%arg0: i32) -> (i32, i32) {
    %c0_i32 = arith.constant 0 : i32
    %c0_i32_0 = arith.constant 0 : i32
    %c0_i32_1 = arith.constant 0 : i32
    return %c0_i32, %c0_i32_0 : i32, i32
  }
  func.func @transform_4(%arg0: i32) -> (i32, i32) {
    %c0_i32 = arith.constant 0 : i32
    %c0_i32_0 = arith.constant 0 : i32
    %c0_i32_1 = arith.constant 0 : i32
    return %c0_i32, %c0_i32_0 : i32, i32
  }
  func.func @transform_5(%arg0: i32) -> (i32, i32) {
    %c0_i32 = arith.constant 0 : i32
    %c0_i32_0 = arith.constant 0 : i32
    %c0_i32_1 = arith.constant 0 : i32
    return %c0_i32, %c0_i32_0 : i32, i32
  }
  func.func @transform_6(%arg0: i32) -> (i32, i32) {
    %c0_i32 = arith.constant 0 : i32
    %c0_i32_0 = arith.constant 0 : i32
    %c0_i32_1 = arith.constant 0 : i32
    return %c0_i32, %c0_i32_0 : i32, i32
  }
  func.func @transform_7(%arg0: i32) -> (i32, i32) {
    %c0_i32 = arith.constant 0 : i32
    %c0_i32_0 = arith.constant 0 : i32
    %c0_i32_1 = arith.constant 0 : i32
    return %c0_i32, %c0_i32_0 : i32, i32
  }
  func.func @transform_8(%arg0: i32) -> (i32, i32) {
    %c0_i32 = arith.constant 0 : i32
    %c0_i32_0 = arith.constant 0 : i32
    %c0_i32_1 = arith.constant 0 : i32
    return %c0_i32, %c0_i32_0 : i32, i32
  }
  func.func @transform_9(%arg0: i32) -> (i32, i32) {
    %c0_i32 = arith.constant 0 : i32
    %c0_i32_0 = arith.constant 0 : i32
    return %arg0, %c0_i32 : i32, i32
  }
}

</mosaic_0001>

<llo_original>
// kernel: tpu_custom_call.1
$region0: #{tpu_custom_call.1}
  #allocation0 [shape = 'u32[]', space=smem, size = 0x4, offset = 0x4, fixed_abs, tag = 'smem constant byte address 0x4 - core index']
  #allocation1 [shape = 'u32[72,128]{1,0:T(1,128)}', space=vmem, size = 0x9000, scoped, tag = 'internal scratch']
  %s0 = inlined_call_operand.vmem [shape: bf16[256,32], index: 0, kind: input, shape index: {}]
  %s1 = inlined_call_operand.vmem [shape: bf16[32,128], index: 1, kind: input, shape index: {}]
  %s2 = inlined_call_operand.vmem [shape: f32[1,128], index: 2, kind: input, shape index: {}]
  %s3 = inlined_call_operand.vmem [shape: bf16[128,128], index: 3, kind: input, shape index: {}]
  %s4 = inlined_call_operand.vmem [shape: f32[1,128], index: 4, kind: input, shape index: {}]
  %s5 = inlined_call_operand.vmem [shape: bf16[128,128], index: 5, kind: input, shape index: {}]
  %s6 = inlined_call_operand.vmem [shape: f32[1,128], index: 6, kind: input, shape index: {}]
  %s7 = inlined_call_operand.hbm [shape: bf16[128,128], index: 7, kind: input, shape index: {}]
  %s8 = inlined_call_operand.vmem [shape: f32[1,128], index: 8, kind: input, shape index: {}]
  %s9 = inlined_call_operand.hbm [shape: f32[256,128], index: 9, kind: output, shape index: {}]
  %s10 = sld [smem:[#allocation0]]
  $region50: #{tpu_custom_call.1} parent=0
    _
  %s12 = ssub.s32 1, %s10
  %s13 = scalar_select 0, %s12, %s10
  $region1: #{tpu_custom_call.1} parent=0
    #allocation2 [shape = 'u8[32768]{0}', space=vmem, size = 0x8000, scoped, tag = 'input window, operand 7, single buffered']
    #allocation3 [shape = 's32[1]{0}', space=sflag, size = 0x4, scoped, tag = 'scoped memory for tpu_custom_call.1']
    #allocation4 [shape = 's32[1]{0}', space=sflag, size = 0x4, scoped, tag = 'scoped memory for tpu_custom_call.1']
    #allocation5 [shape = 'u8[131072]{0}', space=vmem, size = 0x20000, scoped, tag = 'output window, operand 0, single buffered']
    %14 = vsyncpa [#allocation3], 0
    %15 = vsyncpa [#allocation4], 0
    // Predicated region
    $region2: #{tpu_custom_call.1} parent=1 // pred_check
      _
    $region3: #{tpu_custom_call.1} parent=1 // pred_check_branch
      %17 = sbr.rel (0) target = $region5
    $region4: #{tpu_custom_call.1} parent=1 // pred_region
      _
    $region5: #{tpu_custom_call.1} parent=1 // pred_fallthru
      _
    // Predicated region
    $region6: #{tpu_custom_call.1} parent=1 // pred_check
      _
    $region7: #{tpu_custom_call.1} parent=1 // pred_check_branch
      %19 = sbr.rel (0) target = $region9
    $region8: #{tpu_custom_call.1} parent=1 // pred_region
      _
    $region9: #{tpu_custom_call.1} parent=1 // pred_fallthru
      _
    // Predicated region
    $region10: #{tpu_custom_call.1} parent=1 // pred_check
      _
    $region11: #{tpu_custom_call.1} parent=1 // pred_check_branch
      %21 = sbr.rel (0) target = $region13
    $region12: #{tpu_custom_call.1} parent=1 // pred_region
      _
    $region13: #{tpu_custom_call.1} parent=1 // pred_fallthru
      _
    // Predicated region
    $region14: #{tpu_custom_call.1} parent=1 // pred_check
      _
    $region15: #{tpu_custom_call.1} parent=1 // pred_check_branch
      %23 = sbr.rel (0) target = $region17
    $region16: #{tpu_custom_call.1} parent=1 // pred_region
      _
    $region17: #{tpu_custom_call.1} parent=1 // pred_fallthru
      _
    // Predicated region
    $region18: #{tpu_custom_call.1} parent=1 // pred_check
      _
    $region19: #{tpu_custom_call.1} parent=1 // pred_check_branch
      %25 = sbr.rel (0) target = $region21
    $region20: #{tpu_custom_call.1} parent=1 // pred_region
      _
    $region21: #{tpu_custom_call.1} parent=1 // pred_fallthru
      _
    // Predicated region
    $region22: #{tpu_custom_call.1} parent=1 // pred_check
      _
    $region23: #{tpu_custom_call.1} parent=1 // pred_check_branch
      %27 = sbr.rel (0) target = $region25
    $region24: #{tpu_custom_call.1} parent=1 // pred_region
      _
    $region25: #{tpu_custom_call.1} parent=1 // pred_fallthru
      _
    // Predicated region
    $region26: #{tpu_custom_call.1} parent=1 // pred_check
      _
    $region27: #{tpu_custom_call.1} parent=1 // pred_check_branch
      %29 = sbr.rel (0) target = $region29
    $region28: #{tpu_custom_call.1} parent=1 // pred_region
      _
    $region29: #{tpu_custom_call.1} parent=1 // pred_fallthru
      _
    // Predicated region
    $region30: #{tpu_custom_call.1} parent=1 // pred_check
      _
    $region31: #{tpu_custom_call.1} parent=1 // pred_check_branch
      %31 = sbr.rel (0) target = $region33
    $region32: #{tpu_custom_call.1} parent=1 // pred_region
      %33 = vsyncadd [#allocation3], 0
      %s34 = sshll.u32 %s7, 4
      %s35 = int_to_ptr.hbm [resolvable:$true] %s34
      %s36 = sshll.u32 [#allocation2], 4
      %s37 = int_to_ptr.vmem [resolvable:$true] %s36
      %42 = dma.hbm_to_vmem [thread:$0]  %s35, 1024, %s37, [#allocation3], 64, 64, 4
    $region33: #{tpu_custom_call.1} parent=1 // pred_fallthru
      _
    // Predicated region
    $region34: #{tpu_custom_call.1} parent=1 // pred_check
      _
    $region35: #{tpu_custom_call.1} parent=1 // pred_check_branch
      %44 = sbr.rel (0) target = $region37
    $region36: #{tpu_custom_call.1} parent=1 // pred_region
      _
    $region37: #{tpu_custom_call.1} parent=1 // pred_fallthru
      _
    // Predicated region
    $region38: #{tpu_custom_call.1} parent=1 // pred_check
      _
    $region39: #{tpu_custom_call.1} parent=1 // pred_check_branch
      %46 = sbr.rel (0) target = $region41
    $region40: #{tpu_custom_call.1} parent=1 // pred_region
      %48 = dma.done [#allocation3], 1024
    $region41: #{tpu_custom_call.1} parent=1 // pred_fallthru
      _
    %v50 = vld [vmem:[%s0] sm:$0xf]
    %v51 = vld [vmem:[%s0 + $0x4] sm:$0xf]
    %v52 = vld [vmem:[%s0 + $0x8] sm:$0xf]
    %v53 = vld [vmem:[%s0 + $0xc] sm:$0xf]
    %v54 = vld [vmem:[%s0 + $0x10] sm:$0xf]
    %v55 = vld [vmem:[%s0 + $0x14] sm:$0xf]
    %v56 = vld [vmem:[%s0 + $0x18] sm:$0xf]
    %v57 = vld [vmem:[%s0 + $0x1c] sm:$0xf]
    %v58 = vld [vmem:[%s0 + $0x20] sm:$0xf]
    %v59 = vld [vmem:[%s0 + $0x24] sm:$0xf]
    %v60 = vld [vmem:[%s0 + $0x28] sm:$0xf]
    %v61 = vld [vmem:[%s0 + $0x2c] sm:$0xf]
    %v62 = vld [vmem:[%s0 + $0x30] sm:$0xf]
    %v63 = vld [vmem:[%s0 + $0x34] sm:$0xf]
    %v64 = vld [vmem:[%s0 + $0x38] sm:$0xf]
    %v65 = vld [vmem:[%s0 + $0x3c] sm:$0xf]
    %v66 = vld [vmem:[%s0 + $0x40] sm:$0xf]
    %v67 = vld [vmem:[%s0 + $0x44] sm:$0xf]
    %v68 = vld [vmem:[%s0 + $0x48] sm:$0xf]
    %v69 = vld [vmem:[%s0 + $0x4c] sm:$0xf]
    %v70 = vld [vmem:[%s0 + $0x50] sm:$0xf]
    %v71 = vld [vmem:[%s0 + $0x54] sm:$0xf]
    %v72 = vld [vmem:[%s0 + $0x58] sm:$0xf]
    %v73 = vld [vmem:[%s0 + $0x5c] sm:$0xf]
    %v74 = vld [vmem:[%s0 + $0x60] sm:$0xf]
    %v75 = vld [vmem:[%s0 + $0x64] sm:$0xf]
    %v76 = vld [vmem:[%s0 + $0x68] sm:$0xf]
    %v77 = vld [vmem:[%s0 + $0x6c] sm:$0xf]
    %v78 = vld [vmem:[%s0 + $0x70] sm:$0xf]
    %v79 = vld [vmem:[%s0 + $0x74] sm:$0xf]
    %v80 = vld [vmem:[%s0 + $0x78] sm:$0xf]
    %v81 = vld [vmem:[%s0 + $0x7c] sm:$0xf]
    %v82 = vld [vmem:[%s1] sm:$0xf]
    %v83 = vld [vmem:[%s1 + $0x4] sm:$0xf]
    %v84 = vld [vmem:[%s1 + $0x8] sm:$0xf]
    %v85 = vld [vmem:[%s1 + $0xc] sm:$0xf]
    %v86 = vld [vmem:[%s2] sm:$0x1]
    %v88 = vperm.slane %v86, 0
    %v122 = vunpack.c.l.b16 %v50
    %v123 = vunpack.c.l.b16 %v51
    %v124 = vunpack.c.l.b16 %v52
    %v125 = vunpack.c.l.b16 %v53
    %v126 = vunpack.c.l.b16 %v54
    %v127 = vunpack.c.l.b16 %v55
    %v128 = vunpack.c.l.b16 %v56
    %v129 = vunpack.c.l.b16 %v57
    %v130 = vunpack.c.l.b16 %v58
    %v131 = vunpack.c.l.b16 %v59
    %v132 = vunpack.c.l.b16 %v60
    %v133 = vunpack.c.l.b16 %v61
    %v134 = vunpack.c.l.b16 %v62
    %v135 = vunpack.c.l.b16 %v63
    %v136 = vunpack.c.l.b16 %v64
    %v137 = vunpack.c.l.b16 %v65
    %v138 = vunpack.c.l.b16 %v66
    %v139 = vunpack.c.l.b16 %v67
    %v140 = vunpack.c.l.b16 %v68
    %v141 = vunpack.c.l.b16 %v69
    %v142 = vunpack.c.l.b16 %v70
    %v143 = vunpack.c.l.b16 %v71
    %v144 = vunpack.c.l.b16 %v72
    %v145 = vunpack.c.l.b16 %v73
    %v146 = vunpack.c.l.b16 %v74
    %v147 = vunpack.c.l.b16 %v75
    %v148 = vunpack.c.l.b16 %v76
    %v149 = vunpack.c.l.b16 %v77
    %v150 = vunpack.c.l.b16 %v78
    %v151 = vunpack.c.l.b16 %v79
    %v152 = vunpack.c.l.b16 %v80
    %v153 = vunpack.c.l.b16 %v81
    %v154 = vpack.c.b16 %v123, %v122
    %v155 = vpack.c.b16 %v125, %v124
    %v156 = vpack.c.b16 %v127, %v126
    %v157 = vpack.c.b16 %v129, %v128
    %v158 = vpack.c.b16 %v131, %v130
    %v159 = vpack.c.b16 %v133, %v132
    %v160 = vpack.c.b16 %v135, %v134
    %v161 = vpack.c.b16 %v137, %v136
    %v162 = vpack.c.b16 %v139, %v138
    %v163 = vpack.c.b16 %v141, %v140
    %v164 = vpack.c.b16 %v143, %v142
    %v165 = vpack.c.b16 %v145, %v144
    %v166 = vpack.c.b16 %v147, %v146
    %v167 = vpack.c.b16 %v149, %v148
    %v168 = vpack.c.b16 %v151, %v150
    %v169 = vpack.c.b16 %v153, %v152
    %v174 = vunpack.c.l.b16 %v82
    %v175 = vunpack.c.l.b16 %v83
    %v176 = vunpack.c.l.b16 %v84
    %v177 = vunpack.c.l.b16 %v85
    %v178 = vpack.c.b16 %v175, %v174
    %v179 = vpack.c.b16 %v177, %v176
    %vm182 = vcmask 261120
    %v184 = vsel %vm182, %v154, 0
    %v187 = vsel %vm182, %v155, 0
    %v190 = vsel %vm182, %v156, 0
    %v193 = vsel %vm182, %v157, 0
    %v196 = vsel %vm182, %v158, 0
    %v199 = vsel %vm182, %v159, 0
    %v202 = vsel %vm182, %v160, 0
    %v205 = vsel %vm182, %v161, 0
    %v208 = vsel %vm182, %v162, 0
    %v211 = vsel %vm182, %v163, 0
    %v214 = vsel %vm182, %v164, 0
    %v217 = vsel %vm182, %v165, 0
    %v220 = vsel %vm182, %v166, 0
    %v223 = vsel %vm182, %v167, 0
    %v226 = vsel %vm182, %v168, 0
    %v229 = vsel %vm182, %v169, 0
    %231 = vmatpush.bf16.msra.mxu0 0
    %232 = vmatpush.bf16.msra.mxu0 0
    %233 = vmatpush.bf16.msra.mxu0 0
    %234 = vmatpush.bf16.msra.mxu0 0
    %235 = vmatpush.bf16.msra.mxu0 0
    %236 = vmatpush.bf16.msra.mxu0 0
    %237 = vmatpush.bf16.msra.mxu0 %v179
    %238 = vmatpush.bf16.msra.mxu0 %v178
    %239 = vmatmul.bf16.gmra.mxu0 %v184
    %v240 = vpop.f32.mrf.mxu0
    %v241 = vadd.f32 %v88, %v240
    %v242 = vpop.f32.mrf.mxu0
    %v243 = vadd.f32 %v88, %v242
    %244 = vmatmul.bf16.gmra.mxu0 %v187
    %v245 = vpop.f32.mrf.mxu0
    %v246 = vadd.f32 %v88, %v245
    %v247 = vpop.f32.mrf.mxu0
    %v248 = vadd.f32 %v88, %v247
    %249 = vmatmul.bf16.gmra.mxu0 %v190
    %v250 = vpop.f32.mrf.mxu0
    %v251 = vadd.f32 %v88, %v250
    %v252 = vpop.f32.mrf.mxu0
    %v253 = vadd.f32 %v88, %v252
    %254 = vmatmul.bf16.gmra.mxu0 %v193
    %v255 = vpop.f32.mrf.mxu0
    %v256 = vadd.f32 %v88, %v255
    %v257 = vpop.f32.mrf.mxu0
    %v258 = vadd.f32 %v88, %v257
    %259 = vmatmul.bf16.gmra.mxu0 %v196
    %v260 = vpop.f32.mrf.mxu0
    %v261 = vadd.f32 %v88, %v260
    %v262 = vpop.f32.mrf.mxu0
    %v263 = vadd.f32 %v88, %v262
    %264 = vmatmul.bf16.gmra.mxu0 %v199
    %v265 = vpop.f32.mrf.mxu0
    %v266 = vadd.f32 %v88, %v265
    %v267 = vpop.f32.mrf.mxu0
    %v268 = vadd.f32 %v88, %v267
    %269 = vmatmul.bf16.gmra.mxu0 %v202
    %v270 = vpop.f32.mrf.mxu0
    %v271 = vadd.f32 %v88, %v270
    %v272 = vpop.f32.mrf.mxu0
    %v273 = vadd.f32 %v88, %v272
    %274 = vmatmul.bf16.gmra.mxu0 %v205
    %v275 = vpop.f32.mrf.mxu0
    %v276 = vadd.f32 %v88, %v275
    %v277 = vpop.f32.mrf.mxu0
    %v278 = vadd.f32 %v88, %v277
    %279 = vmatmul.bf16.gmra.mxu0 %v208
    %v280 = vpop.f32.mrf.mxu0
    %v281 = vadd.f32 %v88, %v280
    %v282 = vpop.f32.mrf.mxu0
    %v283 = vadd.f32 %v88, %v282
    %284 = vmatmul.bf16.gmra.mxu0 %v211
    %v285 = vpop.f32.mrf.mxu0
    %v286 = vadd.f32 %v88, %v285
    %v287 = vpop.f32.mrf.mxu0
    %v288 = vadd.f32 %v88, %v287
    %289 = vmatmul.bf16.gmra.mxu0 %v214
    %v290 = vpop.f32.mrf.mxu0
    %v291 = vadd.f32 %v88, %v290
    %v292 = vpop.f32.mrf.mxu0
    %v293 = vadd.f32 %v88, %v292
    %294 = vmatmul.bf16.gmra.mxu0 %v217
    %v295 = vpop.f32.mrf.mxu0
    %v296 = vadd.f32 %v88, %v295
    %v297 = vpop.f32.mrf.mxu0
    %v298 = vadd.f32 %v88, %v297
    %299 = vmatmul.bf16.gmra.mxu0 %v220
    %v300 = vpop.f32.mrf.mxu0
    %v301 = vadd.f32 %v88, %v300
    %v302 = vpop.f32.mrf.mxu0
    %v303 = vadd.f32 %v88, %v302
    %304 = vmatmul.bf16.gmra.mxu0 %v223
    %v305 = vpop.f32.mrf.mxu0
    %v306 = vadd.f32 %v88, %v305
    %v307 = vpop.f32.mrf.mxu0
    %v308 = vadd.f32 %v88, %v307
    %309 = vmatmul.bf16.gmra.mxu0 %v226
    %v310 = vpop.f32.mrf.mxu0
    %v311 = vadd.f32 %v88, %v310
    %v312 = vpop.f32.mrf.mxu0
    %v313 = vadd.f32 %v88, %v312
    %314 = vmatmul.bf16.gmra.mxu0 %v229
    %v315 = vpop.f32.mrf.mxu0
    %v316 = vadd.f32 %v88, %v315
    %v317 = vpop.f32.mrf.mxu0
    %v318 = vadd.f32 %v88, %v317
    %319 = vdwg.mxu0
    %v320 = vmax.f32 %v241, 0.0
    %v321 = vmax.f32 %v243, 0.0
    %v322 = vmax.f32 %v246, 0.0
    %v323 = vmax.f32 %v248, 0.0
    %v324 = vmax.f32 %v251, 0.0
    %v325 = vmax.f32 %v253, 0.0
    %v326 = vmax.f32 %v256, 0.0
    %v327 = vmax.f32 %v258, 0.0
    %v328 = vmax.f32 %v261, 0.0
    %v329 = vmax.f32 %v263, 0.0
    %v330 = vmax.f32 %v266, 0.0
    %v331 = vmax.f32 %v268, 0.0
    %v332 = vmax.f32 %v271, 0.0
    %v333 = vmax.f32 %v273, 0.0
    %v334 = vmax.f32 %v276, 0.0
    %v335 = vmax.f32 %v278, 0.0
    %v336 = vmax.f32 %v281, 0.0
    %v337 = vmax.f32 %v283, 0.0
    %v338 = vmax.f32 %v286, 0.0
    %v339 = vmax.f32 %v288, 0.0
    %v340 = vmax.f32 %v291, 0.0
    %v341 = vmax.f32 %v293, 0.0
    %v342 = vmax.f32 %v296, 0.0
    %v343 = vmax.f32 %v298, 0.0
    %v344 = vmax.f32 %v301, 0.0
    %v345 = vmax.f32 %v303, 0.0
    %v346 = vmax.f32 %v306, 0.0
    %v347 = vmax.f32 %v308, 0.0
    %v348 = vmax.f32 %v311, 0.0
    %v349 = vmax.f32 %v313, 0.0
    %v350 = vmax.f32 %v316, 0.0
    %v351 = vmax.f32 %v318, 0.0
    %v352 = vpack.c.bf16 %v321, %v320
    %v353 = vpack.c.bf16 %v323, %v322
    %v354 = vpack.c.bf16 %v325, %v324
    %v355 = vpack.c.bf16 %v327, %v326
    %v356 = vpack.c.bf16 %v329, %v328
    %v357 = vpack.c.bf16 %v331, %v330
    %v358 = vpack.c.bf16 %v333, %v332
    %v359 = vpack.c.bf16 %v335, %v334
    %v360 = vpack.c.bf16 %v337, %v336
    %v361 = vpack.c.bf16 %v339, %v338
    %v362 = vpack.c.bf16 %v341, %v340
    %v363 = vpack.c.bf16 %v343, %v342
    %v364 = vpack.c.bf16 %v345, %v344
    %v365 = vpack.c.bf16 %v347, %v346
    %v366 = vpack.c.bf16 %v349, %v348
    %v367 = vpack.c.bf16 %v351, %v350
    %v368 = vld [vmem:[%s3] sm:$0xf]
    %v369 = vld [vmem:[%s3 + $0x4] sm:$0xf]
    %v370 = vld [vmem:[%s3 + $0x8] sm:$0xf]
    %v371 = vld [vmem:[%s3 + $0xc] sm:$0xf]
    %v372 = vld [vmem:[%s3 + $0x10] sm:$0xf]
    %v373 = vld [vmem:[%s3 + $0x14] sm:$0xf]
    %v374 = vld [vmem:[%s3 + $0x18] sm:$0xf]
    %v375 = vld [vmem:[%s3 + $0x1c] sm:$0xf]
    %v376 = vld [vmem:[%s3 + $0x20] sm:$0xf]
    %v377 = vld [vmem:[%s3 + $0x24] sm:$0xf]
    %v378 = vld [vmem:[%s3 + $0x28] sm:$0xf]
    %v379 = vld [vmem:[%s3 + $0x2c] sm:$0xf]
    %v380 = vld [vmem:[%s3 + $0x30] sm:$0xf]
    %v381 = vld [vmem:[%s3 + $0x34] sm:$0xf]
    %v382 = vld [vmem:[%s3 + $0x38] sm:$0xf]
    %v383 = vld [vmem:[%s3 + $0x3c] sm:$0xf]
    %v384 = vld [vmem:[%s4] sm:$0x1]
    %v386 = vperm.slane %v384, 0
    %v404 = vunpack.c.l.b16 %v368
    %v405 = vunpack.c.l.b16 %v369
    %v406 = vunpack.c.l.b16 %v370
    %v407 = vunpack.c.l.b16 %v371
    %v408 = vunpack.c.l.b16 %v372
    %v409 = vunpack.c.l.b16 %v373
    %v410 = vunpack.c.l.b16 %v374
    %v411 = vunpack.c.l.b16 %v375
    %v412 = vunpack.c.l.b16 %v376
    %v413 = vunpack.c.l.b16 %v377
    %v414 = vunpack.c.l.b16 %v378
    %v415 = vunpack.c.l.b16 %v379
    %v416 = vunpack.c.l.b16 %v380
    %v417 = vunpack.c.l.b16 %v381
    %v418 = vunpack.c.l.b16 %v382
    %v419 = vunpack.c.l.b16 %v383
    %v420 = vpack.c.b16 %v405, %v404
    %v421 = vpack.c.b16 %v407, %v406
    %v422 = vpack.c.b16 %v409, %v408
    %v423 = vpack.c.b16 %v411, %v410
    %v424 = vpack.c.b16 %v413, %v412
    %v425 = vpack.c.b16 %v415, %v414
    %v426 = vpack.c.b16 %v417, %v416
    %v427 = vpack.c.b16 %v419, %v418
    %436 = vmatpush.bf16.msra.mxu0 %v427
    %437 = vmatpush.bf16.msra.mxu0 %v426
    %438 = vmatpush.bf16.msra.mxu0 %v425
    %439 = vmatpush.bf16.msra.mxu0 %v424
    %440 = vmatpush.bf16.msra.mxu0 %v423
    %441 = vmatpush.bf16.msra.mxu0 %v422
    %442 = vmatpush.bf16.msra.mxu0 %v421
    %443 = vmatpush.bf16.msra.mxu0 %v420
    %444 = vmatmul.bf16.gmra.mxu0 %v352
    %v445 = vpop.f32.mrf.mxu0
    %v446 = vadd.f32 %v386, %v445
    %v447 = vpop.f32.mrf.mxu0
    %v448 = vadd.f32 %v386, %v447
    %449 = vmatmul.bf16.gmra.mxu0 %v353
    %v450 = vpop.f32.mrf.mxu0
    %v451 = vadd.f32 %v386, %v450
    %v452 = vpop.f32.mrf.mxu0
    %v453 = vadd.f32 %v386, %v452
    %454 = vmatmul.bf16.gmra.mxu0 %v354
    %v455 = vpop.f32.mrf.mxu0
    %v456 = vadd.f32 %v386, %v455
    %v457 = vpop.f32.mrf.mxu0
    %v458 = vadd.f32 %v386, %v457
    %459 = vmatmul.bf16.gmra.mxu0 %v355
    %v460 = vpop.f32.mrf.mxu0
    %v461 = vadd.f32 %v386, %v460
    %v462 = vpop.f32.mrf.mxu0
    %v463 = vadd.f32 %v386, %v462
    %464 = vmatmul.bf16.gmra.mxu0 %v356
    %v465 = vpop.f32.mrf.mxu0
    %v466 = vadd.f32 %v386, %v465
    %v467 = vpop.f32.mrf.mxu0
    %v468 = vadd.f32 %v386, %v467
    %469 = vmatmul.bf16.gmra.mxu0 %v357
    %v470 = vpop.f32.mrf.mxu0
    %v471 = vadd.f32 %v386, %v470
    %v472 = vpop.f32.mrf.mxu0
    %v473 = vadd.f32 %v386, %v472
    %474 = vmatmul.bf16.gmra.mxu0 %v358
    %v475 = vpop.f32.mrf.mxu0
    %v476 = vadd.f32 %v386, %v475
    %v477 = vpop.f32.mrf.mxu0
    %v478 = vadd.f32 %v386, %v477
    %479 = vmatmul.bf16.gmra.mxu0 %v359
    %v480 = vpop.f32.mrf.mxu0
    %v481 = vadd.f32 %v386, %v480
    %v482 = vpop.f32.mrf.mxu0
    %v483 = vadd.f32 %v386, %v482
    %484 = vmatmul.bf16.gmra.mxu0 %v360
    %v485 = vpop.f32.mrf.mxu0
    %v486 = vadd.f32 %v386, %v485
    %v487 = vpop.f32.mrf.mxu0
    %v488 = vadd.f32 %v386, %v487
    %489 = vmatmul.bf16.gmra.mxu0 %v361
    %v490 = vpop.f32.mrf.mxu0
    %v491 = vadd.f32 %v386, %v490
    %v492 = vpop.f32.mrf.mxu0
    %v493 = vadd.f32 %v386, %v492
    %494 = vmatmul.bf16.gmra.mxu0 %v362
    %v495 = vpop.f32.mrf.mxu0
    %v496 = vadd.f32 %v386, %v495
    %v497 = vpop.f32.mrf.mxu0
    %v498 = vadd.f32 %v386, %v497
    %499 = vmatmul.bf16.gmra.mxu0 %v363
    %v500 = vpop.f32.mrf.mxu0
    %v501 = vadd.f32 %v386, %v500
    %v502 = vpop.f32.mrf.mxu0
    %v503 = vadd.f32 %v386, %v502
    %504 = vmatmul.bf16.gmra.mxu0 %v364
    %v505 = vpop.f32.mrf.mxu0
    %v506 = vadd.f32 %v386, %v505
    %v507 = vpop.f32.mrf.mxu0
    %v508 = vadd.f32 %v386, %v507
    %509 = vmatmul.bf16.gmra.mxu0 %v365
    %v510 = vpop.f32.mrf.mxu0
    %v511 = vadd.f32 %v386, %v510
    %v512 = vpop.f32.mrf.mxu0
    %v513 = vadd.f32 %v386, %v512
    %514 = vmatmul.bf16.gmra.mxu0 %v366
    %v515 = vpop.f32.mrf.mxu0
    %v516 = vadd.f32 %v386, %v515
    %v517 = vpop.f32.mrf.mxu0
    %v518 = vadd.f32 %v386, %v517
    %519 = vmatmul.bf16.gmra.mxu0 %v367
    %v520 = vpop.f32.mrf.mxu0
    %v521 = vadd.f32 %v386, %v520
    %v522 = vpop.f32.mrf.mxu0
    %v523 = vadd.f32 %v386, %v522
    %524 = vdwg.mxu0
    %v525 = vmax.f32 %v446, 0.0
    %v526 = vmax.f32 %v448, 0.0
    %v527 = vmax.f32 %v451, 0.0
    %v528 = vmax.f32 %v453, 0.0
    %v529 = vmax.f32 %v456, 0.0
    %v530 = vmax.f32 %v458, 0.0
    %v531 = vmax.f32 %v461, 0.0
    %v532 = vmax.f32 %v463, 0.0
    %v533 = vmax.f32 %v466, 0.0
    %v534 = vmax.f32 %v468, 0.0
    %v535 = vmax.f32 %v471, 0.0
    %v536 = vmax.f32 %v473, 0.0
    %v537 = vmax.f32 %v476, 0.0
    %v538 = vmax.f32 %v478, 0.0
    %v539 = vmax.f32 %v481, 0.0
    %v540 = vmax.f32 %v483, 0.0
    %v541 = vmax.f32 %v486, 0.0
    %v542 = vmax.f32 %v488, 0.0
    %v543 = vmax.f32 %v491, 0.0
    %v544 = vmax.f32 %v493, 0.0
    %v545 = vmax.f32 %v496, 0.0
    %v546 = vmax.f32 %v498, 0.0
    %v547 = vmax.f32 %v501, 0.0
    %v548 = vmax.f32 %v503, 0.0
    %v549 = vmax.f32 %v506, 0.0
    %v550 = vmax.f32 %v508, 0.0
    %v551 = vmax.f32 %v511, 0.0
    %v552 = vmax.f32 %v513, 0.0
    %v553 = vmax.f32 %v516, 0.0
    %v554 = vmax.f32 %v518, 0.0
    %v555 = vmax.f32 %v521, 0.0
    %v556 = vmax.f32 %v523, 0.0
    %v557 = vpack.c.bf16 %v526, %v525
    %v558 = vpack.c.bf16 %v528, %v527
    %v559 = vpack.c.bf16 %v530, %v529
    %v560 = vpack.c.bf16 %v532, %v531
    %v561 = vpack.c.bf16 %v534, %v533
    %v562 = vpack.c.bf16 %v536, %v535
    %v563 = vpack.c.bf16 %v538, %v537
    %v564 = vpack.c.bf16 %v540, %v539
    %v565 = vpack.c.bf16 %v542, %v541
    %v566 = vpack.c.bf16 %v544, %v543
    %v567 = vpack.c.bf16 %v546, %v545
    %v568 = vpack.c.bf16 %v548, %v547
    %v569 = vpack.c.bf16 %v550, %v549
    %v570 = vpack.c.bf16 %v552, %v551
    %v571 = vpack.c.bf16 %v554, %v553
    %v572 = vpack.c.bf16 %v556, %v555
    %v573 = vld [vmem:[%s5] sm:$0xf]
    %v574 = vld [vmem:[%s5 + $0x4] sm:$0xf]
    %v575 = vld [vmem:[%s5 + $0x8] sm:$0xf]
    %v576 = vld [vmem:[%s5 + $0xc] sm:$0xf]
    %v577 = vld [vmem:[%s5 + $0x10] sm:$0xf]
    %v578 = vld [vmem:[%s5 + $0x14] sm:$0xf]
    %v579 = vld [vmem:[%s5 + $0x18] sm:$0xf]
    %v580 = vld [vmem:[%s5 + $0x1c] sm:$0xf]
    %v581 = vld [vmem:[%s5 + $0x20] sm:$0xf]
    %v582 = vld [vmem:[%s5 + $0x24] sm:$0xf]
    %v583 = vld [vmem:[%s5 + $0x28] sm:$0xf]
    %v584 = vld [vmem:[%s5 + $0x2c] sm:$0xf]
    %v585 = vld [vmem:[%s5 + $0x30] sm:$0xf]
    %v586 = vld [vmem:[%s5 + $0x34] sm:$0xf]
    %v587 = vld [vmem:[%s5 + $0x38] sm:$0xf]
    %v588 = vld [vmem:[%s5 + $0x3c] sm:$0xf]
    %v589 = vld [vmem:[%s6] sm:$0x1]
    %v591 = vperm.slane %v589, 0
    %v609 = vunpack.c.l.b16 %v573
    %v610 = vunpack.c.l.b16 %v574
    %v611 = vunpack.c.l.b16 %v575
    %v612 = vunpack.c.l.b16 %v576
    %v613 = vunpack.c.l.b16 %v577
    %v614 = vunpack.c.l.b16 %v578
    %v615 = vunpack.c.l.b16 %v579
    %v616 = vunpack.c.l.b16 %v580
    %v617 = vunpack.c.l.b16 %v581
    %v618 = vunpack.c.l.b16 %v582
    %v619 = vunpack.c.l.b16 %v583
    %v620 = vunpack.c.l.b16 %v584
    %v621 = vunpack.c.l.b16 %v585
    %v622 = vunpack.c.l.b16 %v586
    %v623 = vunpack.c.l.b16 %v587
    %v624 = vunpack.c.l.b16 %v588
    %v625 = vpack.c.b16 %v610, %v609
    %v626 = vpack.c.b16 %v612, %v611
    %v627 = vpack.c.b16 %v614, %v613
    %v628 = vpack.c.b16 %v616, %v615
    %v629 = vpack.c.b16 %v618, %v617
    %v630 = vpack.c.b16 %v620, %v619
    %v631 = vpack.c.b16 %v622, %v621
    %v632 = vpack.c.b16 %v624, %v623
    %641 = vmatpush.bf16.msra.mxu0 %v632
    %642 = vmatpush.bf16.msra.mxu0 %v631
    %643 = vmatpush.bf16.msra.mxu0 %v630
    %644 = vmatpush.bf16.msra.mxu0 %v629
    %645 = vmatpush.bf16.msra.mxu0 %v628
    %646 = vmatpush.bf16.msra.mxu0 %v627
    %647 = vmatpush.bf16.msra.mxu0 %v626
    %648 = vmatpush.bf16.msra.mxu0 %v625
    %649 = vmatmul.bf16.gmra.mxu0 %v557
    %v650 = vpop.f32.mrf.mxu0
    %v651 = vadd.f32 %v591, %v650
    %v652 = vpop.f32.mrf.mxu0
    %v653 = vadd.f32 %v591, %v652
    %654 = vmatmul.bf16.gmra.mxu0 %v558
    %v655 = vpop.f32.mrf.mxu0
    %v656 = vadd.f32 %v591, %v655
    %v657 = vpop.f32.mrf.mxu0
    %v658 = vadd.f32 %v591, %v657
    %659 = vmatmul.bf16.gmra.mxu0 %v559
    %v660 = vpop.f32.mrf.mxu0
    %v661 = vadd.f32 %v591, %v660
    %v662 = vpop.f32.mrf.mxu0
    %v663 = vadd.f32 %v591, %v662
    %664 = vmatmul.bf16.gmra.mxu0 %v560
    %v665 = vpop.f32.mrf.mxu0
    %v666 = vadd.f32 %v591, %v665
    %v667 = vpop.f32.mrf.mxu0
    %v668 = vadd.f32 %v591, %v667
    %669 = vmatmul.bf16.gmra.mxu0 %v561
    %v670 = vpop.f32.mrf.mxu0
    %v671 = vadd.f32 %v591, %v670
    %v672 = vpop.f32.mrf.mxu0
    %v673 = vadd.f32 %v591, %v672
    %674 = vmatmul.bf16.gmra.mxu0 %v562
    %v675 = vpop.f32.mrf.mxu0
    %v676 = vadd.f32 %v591, %v675
    %v677 = vpop.f32.mrf.mxu0
    %v678 = vadd.f32 %v591, %v677
    %679 = vmatmul.bf16.gmra.mxu0 %v563
    %v680 = vpop.f32.mrf.mxu0
    %v681 = vadd.f32 %v591, %v680
    %v682 = vpop.f32.mrf.mxu0
    %v683 = vadd.f32 %v591, %v682
    %684 = vmatmul.bf16.gmra.mxu0 %v564
    %v685 = vpop.f32.mrf.mxu0
    %v686 = vadd.f32 %v591, %v685
    %v687 = vpop.f32.mrf.mxu0
    %v688 = vadd.f32 %v591, %v687
    %689 = vmatmul.bf16.gmra.mxu0 %v565
    %v690 = vpop.f32.mrf.mxu0
    %v691 = vadd.f32 %v591, %v690
    %v692 = vpop.f32.mrf.mxu0
    %v693 = vadd.f32 %v591, %v692
    %694 = vmatmul.bf16.gmra.mxu0 %v566
    %v695 = vpop.f32.mrf.mxu0
    %v696 = vadd.f32 %v591, %v695
    %v697 = vpop.f32.mrf.mxu0
    %v698 = vadd.f32 %v591, %v697
    %699 = vmatmul.bf16.gmra.mxu0 %v567
    %v700 = vpop.f32.mrf.mxu0
    %v701 = vadd.f32 %v591, %v700
    %v702 = vpop.f32.mrf.mxu0
    %v703 = vadd.f32 %v591, %v702
    %704 = vmatmul.bf16.gmra.mxu0 %v568
    %v705 = vpop.f32.mrf.mxu0
    %v706 = vadd.f32 %v591, %v705
    %v707 = vpop.f32.mrf.mxu0
    %v708 = vadd.f32 %v591, %v707
    %709 = vmatmul.bf16.gmra.mxu0 %v569
    %v710 = vpop.f32.mrf.mxu0
    %v711 = vadd.f32 %v591, %v710
    %v712 = vpop.f32.mrf.mxu0
    %v713 = vadd.f32 %v591, %v712
    %714 = vmatmul.bf16.gmra.mxu0 %v570
    %v715 = vpop.f32.mrf.mxu0
    %v716 = vadd.f32 %v591, %v715
    %v717 = vpop.f32.mrf.mxu0
    %v718 = vadd.f32 %v591, %v717
    %719 = vmatmul.bf16.gmra.mxu0 %v571
    %v720 = vpop.f32.mrf.mxu0
    %v721 = vadd.f32 %v591, %v720
    %v722 = vpop.f32.mrf.mxu0
    %v723 = vadd.f32 %v591, %v722
    %724 = vmatmul.bf16.gmra.mxu0 %v572
    %v725 = vpop.f32.mrf.mxu0
    %v726 = vadd.f32 %v591, %v725
    %v727 = vpop.f32.mrf.mxu0
    %v728 = vadd.f32 %v591, %v727
    %729 = vdwg.mxu0
    %v730 = vmax.f32 %v651, 0.0
    %v731 = vmax.f32 %v653, 0.0
    %v732 = vmax.f32 %v656, 0.0
    %v733 = vmax.f32 %v658, 0.0
    %v734 = vmax.f32 %v661, 0.0
    %v735 = vmax.f32 %v663, 0.0
    %v736 = vmax.f32 %v666, 0.0
    %v737 = vmax.f32 %v668, 0.0
    %v738 = vmax.f32 %v671, 0.0
    %v739 = vmax.f32 %v673, 0.0
    %v740 = vmax.f32 %v676, 0.0
    %v741 = vmax.f32 %v678, 0.0
    %v742 = vmax.f32 %v681, 0.0
    %v743 = vmax.f32 %v683, 0.0
    %v744 = vmax.f32 %v686, 0.0
    %v745 = vmax.f32 %v688, 0.0
    %v746 = vmax.f32 %v691, 0.0
    %v747 = vmax.f32 %v693, 0.0
    %v748 = vmax.f32 %v696, 0.0
    %v749 = vmax.f32 %v698, 0.0
    %v750 = vmax.f32 %v701, 0.0
    %v751 = vmax.f32 %v703, 0.0
    %v752 = vmax.f32 %v706, 0.0
    %v753 = vmax.f32 %v708, 0.0
    %v754 = vmax.f32 %v711, 0.0
    %v755 = vmax.f32 %v713, 0.0
    %v756 = vmax.f32 %v716, 0.0
    %v757 = vmax.f32 %v718, 0.0
    %v758 = vmax.f32 %v721, 0.0
    %v759 = vmax.f32 %v723, 0.0
    %v760 = vmax.f32 %v726, 0.0
    %v761 = vmax.f32 %v728, 0.0
    %v762 = vpack.c.bf16 %v731, %v730
    %v763 = vpack.c.bf16 %v733, %v732
    %v764 = vpack.c.bf16 %v735, %v734
    %v765 = vpack.c.bf16 %v737, %v736
    %v766 = vpack.c.bf16 %v739, %v738
    %v767 = vpack.c.bf16 %v741, %v740
    %v768 = vpack.c.bf16 %v743, %v742
    %v769 = vpack.c.bf16 %v745, %v744
    %v770 = vpack.c.bf16 %v747, %v746
    %v771 = vpack.c.bf16 %v749, %v748
    %v772 = vpack.c.bf16 %v751, %v750
    %v773 = vpack.c.bf16 %v753, %v752
    %v774 = vpack.c.bf16 %v755, %v754
    %v775 = vpack.c.bf16 %v757, %v756
    %v776 = vpack.c.bf16 %v759, %v758
    %v777 = vpack.c.bf16 %v761, %v760
    %v778 = vld [vmem:[#allocation2] sm:$0xf]
    %v779 = vld [vmem:[#allocation2 + $0x4] sm:$0xf]
    %v780 = vld [vmem:[#allocation2 + $0x8] sm:$0xf]
    %v781 = vld [vmem:[#allocation2 + $0xc] sm:$0xf]
    %v782 = vld [vmem:[#allocation2 + $0x10] sm:$0xf]
    %v783 = vld [vmem:[#allocation2 + $0x14] sm:$0xf]
    %v784 = vld [vmem:[#allocation2 + $0x18] sm:$0xf]
    %v785 = vld [vmem:[#allocation2 + $0x1c] sm:$0xf]
    %v786 = vld [vmem:[#allocation2 + $0x20] sm:$0xf]
    %v787 = vld [vmem:[#allocation2 + $0x24] sm:$0xf]
    %v788 = vld [vmem:[#allocation2 + $0x28] sm:$0xf]
    %v789 = vld [vmem:[#allocation2 + $0x2c] sm:$0xf]
    %v790 = vld [vmem:[#allocation2 + $0x30] sm:$0xf]
    %v791 = vld [vmem:[#allocation2 + $0x34] sm:$0xf]
    %v792 = vld [vmem:[#allocation2 + $0x38] sm:$0xf]
    %v793 = vld [vmem:[#allocation2 + $0x3c] sm:$0xf]
    %v794 = vld [vmem:[%s8] sm:$0x1]
    %v796 = vperm.slane %v794, 0
    %v814 = vunpack.c.l.b16 %v778
    %v815 = vunpack.c.l.b16 %v779
    %v816 = vunpack.c.l.b16 %v780
    %v817 = vunpack.c.l.b16 %v781
    %v818 = vunpack.c.l.b16 %v782
    %v819 = vunpack.c.l.b16 %v783
    %v820 = vunpack.c.l.b16 %v784
    %v821 = vunpack.c.l.b16 %v785
    %v822 = vunpack.c.l.b16 %v786
    %v823 = vunpack.c.l.b16 %v787
    %v824 = vunpack.c.l.b16 %v788
    %v825 = vunpack.c.l.b16 %v789
    %v826 = vunpack.c.l.b16 %v790
    %v827 = vunpack.c.l.b16 %v791
    %v828 = vunpack.c.l.b16 %v792
    %v829 = vunpack.c.l.b16 %v793
    %v830 = vpack.c.b16 %v815, %v814
    %v831 = vpack.c.b16 %v817, %v816
    %v832 = vpack.c.b16 %v819, %v818
    %v833 = vpack.c.b16 %v821, %v820
    %v834 = vpack.c.b16 %v823, %v822
    %v835 = vpack.c.b16 %v825, %v824
    %v836 = vpack.c.b16 %v827, %v826
    %v837 = vpack.c.b16 %v829, %v828
    %846 = vmatpush.bf16.msra.mxu0 %v837
    %847 = vmatpush.bf16.msra.mxu0 %v836
    %848 = vmatpush.bf16.msra.mxu0 %v835
    %849 = vmatpush.bf16.msra.mxu0 %v834
    %850 = vmatpush.bf16.msra.mxu0 %v833
    %851 = vmatpush.bf16.msra.mxu0 %v832
    %852 = vmatpush.bf16.msra.mxu0 %v831
    %853 = vmatpush.bf16.msra.mxu0 %v830
    %854 = vmatmul.bf16.gmra.mxu0 %v762
    %v855 = vpop.f32.mrf.mxu0
    %v856 = vadd.f32 %v796, %v855
    %v857 = vpop.f32.mrf.mxu0
    %v858 = vadd.f32 %v796, %v857
    %859 = vmatmul.bf16.gmra.mxu0 %v763
    %v860 = vpop.f32.mrf.mxu0
    %v861 = vadd.f32 %v796, %v860
    %v862 = vpop.f32.mrf.mxu0
    %v863 = vadd.f32 %v796, %v862
    %864 = vmatmul.bf16.gmra.mxu0 %v764
    %v865 = vpop.f32.mrf.mxu0
    %v866 = vadd.f32 %v796, %v865
    %v867 = vpop.f32.mrf.mxu0
    %v868 = vadd.f32 %v796, %v867
    %869 = vmatmul.bf16.gmra.mxu0 %v765
    %v870 = vpop.f32.mrf.mxu0
    %v871 = vadd.f32 %v796, %v870
    %v872 = vpop.f32.mrf.mxu0
    %v873 = vadd.f32 %v796, %v872
    %874 = vmatmul.bf16.gmra.mxu0 %v766
    %v875 = vpop.f32.mrf.mxu0
    %v876 = vadd.f32 %v796, %v875
    %v877 = vpop.f32.mrf.mxu0
    %v878 = vadd.f32 %v796, %v877
    %879 = vmatmul.bf16.gmra.mxu0 %v767
    %v880 = vpop.f32.mrf.mxu0
    %v881 = vadd.f32 %v796, %v880
    %v882 = vpop.f32.mrf.mxu0
    %v883 = vadd.f32 %v796, %v882
    %884 = vmatmul.bf16.gmra.mxu0 %v768
    %v885 = vpop.f32.mrf.mxu0
    %v886 = vadd.f32 %v796, %v885
    %v887 = vpop.f32.mrf.mxu0
    %v888 = vadd.f32 %v796, %v887
    %889 = vmatmul.bf16.gmra.mxu0 %v769
    %v890 = vpop.f32.mrf.mxu0
    %v891 = vadd.f32 %v796, %v890
    %v892 = vpop.f32.mrf.mxu0
    %v893 = vadd.f32 %v796, %v892
    %894 = vmatmul.bf16.gmra.mxu0 %v770
    %v895 = vpop.f32.mrf.mxu0
    %v896 = vadd.f32 %v796, %v895
    %v897 = vpop.f32.mrf.mxu0
    %v898 = vadd.f32 %v796, %v897
    %899 = vmatmul.bf16.gmra.mxu0 %v771
    %v900 = vpop.f32.mrf.mxu0
    %v901 = vadd.f32 %v796, %v900
    %v902 = vpop.f32.mrf.mxu0
    %v903 = vadd.f32 %v796, %v902
    %904 = vmatmul.bf16.gmra.mxu0 %v772
    %v905 = vpop.f32.mrf.mxu0
    %v906 = vadd.f32 %v796, %v905
    %v907 = vpop.f32.mrf.mxu0
    %v908 = vadd.f32 %v796, %v907
    %909 = vmatmul.bf16.gmra.mxu0 %v773
    %v910 = vpop.f32.mrf.mxu0
    %v911 = vadd.f32 %v796, %v910
    %v912 = vpop.f32.mrf.mxu0
    %v913 = vadd.f32 %v796, %v912
    %914 = vmatmul.bf16.gmra.mxu0 %v774
    %v915 = vpop.f32.mrf.mxu0
    %v916 = vadd.f32 %v796, %v915
    %v917 = vpop.f32.mrf.mxu0
    %v918 = vadd.f32 %v796, %v917
    %919 = vmatmul.bf16.gmra.mxu0 %v775
    %v920 = vpop.f32.mrf.mxu0
    %v921 = vadd.f32 %v796, %v920
    %v922 = vpop.f32.mrf.mxu0
    %v923 = vadd.f32 %v796, %v922
    %924 = vmatmul.bf16.gmra.mxu0 %v776
    %v925 = vpop.f32.mrf.mxu0
    %v926 = vadd.f32 %v796, %v925
    %v927 = vpop.f32.mrf.mxu0
    %v928 = vadd.f32 %v796, %v927
    %929 = vmatmul.bf16.gmra.mxu0 %v777
    %v930 = vpop.f32.mrf.mxu0
    %v931 = vadd.f32 %v796, %v930
    %v932 = vpop.f32.mrf.mxu0
    %v933 = vadd.f32 %v796, %v932
    %934 = vdwg.mxu0
    %v935 = vmul.f32 %v856, 0.5
    %v936 = vmul.f32 %v858, 0.5
    %v937 = vmul.f32 %v861, 0.5
    %v938 = vmul.f32 %v863, 0.5
    %v939 = vmul.f32 %v866, 0.5
    %v940 = vmul.f32 %v868, 0.5
    %v941 = vmul.f32 %v871, 0.5
    %v942 = vmul.f32 %v873, 0.5
    %v943 = vmul.f32 %v876, 0.5
    %v944 = vmul.f32 %v878, 0.5
    %v945 = vmul.f32 %v881, 0.5
    %v946 = vmul.f32 %v883, 0.5
    %v947 = vmul.f32 %v886, 0.5
    %v948 = vmul.f32 %v888, 0.5
    %v949 = vmul.f32 %v891, 0.5
    %v950 = vmul.f32 %v893, 0.5
    %v951 = vmul.f32 %v896, 0.5
    %v952 = vmul.f32 %v898, 0.5
    %v953 = vmul.f32 %v901, 0.5
    %v954 = vmul.f32 %v903, 0.5
    %v955 = vmul.f32 %v906, 0.5
    %v956 = vmul.f32 %v908, 0.5
    %v957 = vmul.f32 %v911, 0.5
    %v958 = vmul.f32 %v913, 0.5
    %v959 = vmul.f32 %v916, 0.5
    %v960 = vmul.f32 %v918, 0.5
    %v961 = vmul.f32 %v921, 0.5
    %v962 = vmul.f32 %v923, 0.5
    %v963 = vmul.f32 %v926, 0.5
    %v964 = vmul.f32 %v928, 0.5
    %v965 = vmul.f32 %v931, 0.5
    %v966 = vmul.f32 %v933, 0.5
    %v967 = vtanh.pop %v935
    %v968 = vtanh.pop %v936
    %v969 = vtanh.pop %v937
    %v970 = vtanh.pop %v938
    %v971 = vtanh.pop %v939
    %v972 = vtanh.pop %v940
    %v973 = vtanh.pop %v941
    %v974 = vtanh.pop %v942
    %v975 = vtanh.pop %v943
    %v976 = vtanh.pop %v944
    %v977 = vtanh.pop %v945
    %v978 = vtanh.pop %v946
    %v979 = vtanh.pop %v947
    %v980 = vtanh.pop %v948
    %v981 = vtanh.pop %v949
    %v982 = vtanh.pop %v950
    %v983 = vtanh.pop %v951
    %v984 = vtanh.pop %v952
    %v985 = vtanh.pop %v953
    %v986 = vtanh.pop %v954
    %v987 = vtanh.pop %v955
    %v988 = vtanh.pop %v956
    %v989 = vtanh.pop %v957
    %v990 = vtanh.pop %v958
    %v991 = vtanh.pop %v959
    %v992 = vtanh.pop %v960
    %v993 = vtanh.pop %v961
    %v994 = vtanh.pop %v962
    %v995 = vtanh.pop %v963
    %v996 = vtanh.pop %v964
    %v997 = vtanh.pop %v965
    %v998 = vtanh.pop %v966
    %999 = vst [vmem:[#allocation5] sm:$0xff] %v967
    %1000 = vst [vmem:[#allocation5 + $0x8] sm:$0xff] %v968
    %1001 = vst [vmem:[#allocation5 + $0x10] sm:$0xff] %v969
    %1002 = vst [vmem:[#allocation5 + $0x18] sm:$0xff] %v970
    %1003 = vst [vmem:[#allocation5 + $0x20] sm:$0xff] %v971
    %1004 = vst [vmem:[#allocation5 + $0x28] sm:$0xff] %v972
    %1005 = vst [vmem:[#allocation5 + $0x30] sm:$0xff] %v973
    %1006 = vst [vmem:[#allocation5 + $0x38] sm:$0xff] %v974
    %1007 = vst [vmem:[#allocation5 + $0x40] sm:$0xff] %v975
    %1008 = vst [vmem:[#allocation5 + $0x48] sm:$0xff] %v976
    %1009 = vst [vmem:[#allocation5 + $0x50] sm:$0xff] %v977
    %1010 = vst [vmem:[#allocation5 + $0x58] sm:$0xff] %v978
    %1011 = vst [vmem:[#allocation5 + $0x60] sm:$0xff] %v979
    %1012 = vst [vmem:[#allocation5 + $0x68] sm:$0xff] %v980
    %1013 = vst [vmem:[#allocation5 + $0x70] sm:$0xff] %v981
    %1014 = vst [vmem:[#allocation5 + $0x78] sm:$0xff] %v982
    %1015 = vst [vmem:[#allocation5 + $0x80] sm:$0xff] %v983
    %1016 = vst [vmem:[#allocation5 + $0x88] sm:$0xff] %v984
    %1017 = vst [vmem:[#allocation5 + $0x90] sm:$0xff] %v985
    %1018 = vst [vmem:[#allocation5 + $0x98] sm:$0xff] %v986
    %1019 = vst [vmem:[#allocation5 + $0xa0] sm:$0xff] %v987
    %1020 = vst [vmem:[#allocation5 + $0xa8] sm:$0xff] %v988
    %1021 = vst [vmem:[#allocation5 + $0xb0] sm:$0xff] %v989
    %1022 = vst [vmem:[#allocation5 + $0xb8] sm:$0xff] %v990
    %1023 = vst [vmem:[#allocation5 + $0xc0] sm:$0xff] %v991
    %1024 = vst [vmem:[#allocation5 + $0xc8] sm:$0xff] %v992
    %1025 = vst [vmem:[#allocation5 + $0xd0] sm:$0xff] %v993
    %1026 = vst [vmem:[#allocation5 + $0xd8] sm:$0xff] %v994
    %1027 = vst [vmem:[#allocation5 + $0xe0] sm:$0xff] %v995
    %1028 = vst [vmem:[#allocation5 + $0xe8] sm:$0xff] %v996
    %1029 = vst [vmem:[#allocation5 + $0xf0] sm:$0xff] %v997
    %1030 = vst [vmem:[#allocation5 + $0xf8] sm:$0xff] %v998
    // Predicated region
    $region42: #{tpu_custom_call.1} parent=1 // pred_check
      _
    $region43: #{tpu_custom_call.1} parent=1 // pred_check_branch
      %1032 = sbr.rel (0) target = $region45
    $region44: #{tpu_custom_call.1} parent=1 // pred_region
      %1034 = vsyncadd [#allocation4], 0
      %s1035 = sshll.u32 [#allocation5], 4
      %s1036 = int_to_ptr.vmem [resolvable:$true] %s1035
      %s1037 = sshll.u32 %s9, 4
      %s1038 = int_to_ptr.hbm [resolvable:$true] %s1037
      %1043 = dma.vmem_to_hbm [thread:$0]  %s1036, 4096, %s1038, [#allocation4], 128, 128, 8
    $region45: #{tpu_custom_call.1} parent=1 // pred_fallthru
      _
    // Predicated region
    $region46: #{tpu_custom_call.1} parent=1 // pred_check
      _
    $region47: #{tpu_custom_call.1} parent=1 // pred_check_branch
      %1045 = sbr.rel (0) target = $region49
    $region48: #{tpu_custom_call.1} parent=1 // pred_region
      %1047 = dma.done [#allocation4], 4096
    $region49: #{tpu_custom_call.1} parent=1 // pred_fallthru
      _
    %1048 = vsyncpa [#allocation3], 1
    %1049 = vsyncpa [#allocation4], 1

</llo_original>
